<compile_context>
chip_gen: v6e
topology: v6e:2x2x1
jax: 0.10.0
libtpu: 0.0.40
codegen_flags: <defaults>
</compile_context>

<pallas_src>
import jax
import jax.numpy as jnp
from jax.experimental import pallas as pl
from jax.experimental.pallas import tpu as pltpu

SUBLANE = 8          # f32 sublane packing: batch tiles rounded to multiples of this
MIN_TILE = 64        # smallest per-TC batch tile worth splitting for
MAX_TILE = 1024      # large tiles amortize per-step grid overhead; still tiny in VMEM
VMEM_LIMIT = 32 * 1024 * 1024  # safe on v5e/v6e/v7x; tiles here are tiny anyway


def _round_up(x, m):
    return (x + m - 1) // m * m


def _simple_nn_kernel(x_ref, w1_ref, b1_ref, w2_ref, b2_ref, out_ref):
    """out = relu(x @ w1t + b1) @ w2t + b2 with weights in [in, out] layout."""
    x = x_ref[...].astype(w1_ref.dtype)                      # f32 -> bf16 in-kernel
    # fc1: [TM, F] @ [F, H] -> [TM, H] on the MXU, f32 accumulation.
    h = jnp.dot(x, w1_ref[...], preferred_element_type=jnp.float32)
    h = jnp.maximum(h + b1_ref[...], 0.0)                    # bias + ReLU in f32 (VPU)
    # fc2: [TM, H] @ [H, O] -> [TM, O].
    o = jnp.dot(h.astype(w2_ref.dtype), w2_ref[...],
                preferred_element_type=jnp.float32)
    out_ref[...] = (o + b2_ref[...]).astype(out_ref.dtype)


def prepare_params(w1, b1, w2, b2, compute_dtype=jnp.bfloat16):
    """Transpose to [in, out] layout and cast ONCE, outside the hot path.

    w1: [H, F], b1: [H], w2: [O, H], b2: [O]  (PyTorch nn.Linear layout).
    """
    w1t = jnp.asarray(w1).T.astype(compute_dtype)             # [F, H]
    w2t = jnp.asarray(w2).T.astype(compute_dtype)             # [H, O]
    b1r = jnp.asarray(b1).astype(jnp.float32).reshape(1, -1)  # [1, H]
    b2r = jnp.asarray(b2).astype(jnp.float32).reshape(1, -1)  # [1, O]
    return w1t, b1r, w2t, b2r


def _cost_estimate(B, F, H, O, x_dtype_bytes=4, w_dtype_bytes=2):
    flops = 2 * B * (F * H + H * O)
    bytes_accessed = (B * F * x_dtype_bytes            # x in
                      + (F * H + H * O) * w_dtype_bytes  # weights in
                      + (H + O) * 4                      # biases in
                      + B * O * 4)                       # out
    return pl.CostEstimate(flops=flops, transcendentals=0,
                           bytes_accessed=bytes_accessed)


def simple_nn_forward(x, params):
    """x: [B, F] float32; params from prepare_params(). Returns [B, O] float32."""
    w1t, b1r, w2t, b2r = params
    B, F = x.shape
    H = w1t.shape[1]
    O = w2t.shape[1]

    ce = _cost_estimate(B, F, H, O)

    if B < 2 * MIN_TILE:
        # Small batch: single grid-free call, no padding, no pipeline machinery.
        return pl.pallas_call(
            _simple_nn_kernel,
            out_shape=jax.ShapeDtypeStruct((B, O), x.dtype),
            compiler_params=pltpu.CompilerParams(vmem_limit_bytes=VMEM_LIMIT),
            cost_estimate=ce,
        )(x, w1t, b1r, w2t, b2r)

    # Batch-tiled grid: large tiles (fewer step overheads), but always >= 2 tiles
    # so the "parallel" axis can shard across both TensorCores on v7x.
    tile_m = min(MAX_TILE, _round_up((B + 1) // 2, SUBLANE))
    Bp = _round_up(B, tile_m)
    num_tiles = Bp // tile_m

    # Only the batch dim is padded (cheap, no dtype change); feature dim stays F.
    xp = jnp.pad(x, ((0, Bp - B), (0, 0))) if Bp != B else x

    out_p = pl.pallas_call(
        _simple_nn_kernel,
        out_shape=jax.ShapeDtypeStruct((Bp, O), x.dtype),
        grid=(num_tiles,),
        in_specs=[
            pl.BlockSpec((tile_m, F), lambda i: (i, 0)),   # x tile (full F)
            pl.BlockSpec((F, H), lambda i: (0, 0)),        # w1t resident
            pl.BlockSpec((1, H), lambda i: (0, 0)),        # b1 resident
            pl.BlockSpec((H, O), lambda i: (0, 0)),        # w2t resident
            pl.BlockSpec((1, O), lambda i: (0, 0)),        # b2 resident
        ],
        out_specs=pl.BlockSpec((tile_m, O), lambda i: (i, 0)),
        compiler_params=pltpu.CompilerParams(
            dimension_semantics=("parallel",),
            vmem_limit_bytes=VMEM_LIMIT),
        cost_estimate=ce,
    )(xp, w1t, b1r, w2t, b2r)

    return out_p[:B] if Bp != B else out_p


if __name__ == "__main__":
    # Small shapes consistent with SimpleNN(input_size, hidden_size, output_size).
    batch, input_size, hidden_size, output_size = 8, 32, 64, 16

    key = jax.random.PRNGKey(0)
    kx, kw1, kb1, kw2, kb2, kx2 = jax.random.split(key, 6)

    x = jax.random.normal(kx, (batch, input_size), dtype=jnp.float32)

    # Deterministic parameter init (uniform, roughly matching nn.Linear's scheme).
    bound1 = 1.0 / (input_size ** 0.5)
    w1 = jax.random.uniform(kw1, (hidden_size, input_size), jnp.float32, -bound1, bound1)
    b1 = jax.random.uniform(kb1, (hidden_size,), jnp.float32, -bound1, bound1)
    bound2 = 1.0 / (hidden_size ** 0.5)
    w2 = jax.random.uniform(kw2, (output_size, hidden_size), jnp.float32, -bound2, bound2)
    b2 = jax.random.uniform(kb2, (output_size,), jnp.float32, -bound2, bound2)

    params = prepare_params(w1, b1, w2, b2)

    def ref_forward(xx):
        # bf16-input / f32-accumulate reference (matches kernel numerics).
        c = lambda a: a.astype(jnp.bfloat16).astype(jnp.float32)
        h = jnp.maximum(c(xx) @ c(w1).T + b1, 0.0)
        return c(h) @ c(w2).T + b2

    # Case 1: tiny batch -> single grid-free kernel call, no padding anywhere.
    out = jax.block_until_ready(simple_nn_forward(x, params))
    assert out.shape == (batch, output_size)
    assert jnp.allclose(out, ref_forward(x), atol=1e-2, rtol=1e-2), "small-batch mismatch"

    # Case 2: larger batch -> batch-tiled grid (2 "parallel" 256-row tiles).
    x_big = jax.random.normal(kx2, (512, input_size), dtype=jnp.float32)
    out_big = jax.block_until_ready(simple_nn_forward(x_big, params))
    assert out_big.shape == (512, output_size)
    assert jnp.allclose(out_big, ref_forward(x_big), atol=1e-2, rtol=1e-2), "tiled mismatch"

    # Case 3: non-multiple batch exercises the batch-pad + slice path.
    x_odd = jax.random.normal(kw2, (300, input_size), dtype=jnp.float32)
    out_odd = jax.block_until_ready(simple_nn_forward(x_odd, params))
    assert out_odd.shape == (300, output_size)
    assert jnp.allclose(out_odd, ref_forward(x_odd), atol=1e-2, rtol=1e-2), "odd-batch mismatch"

    print("KERNEL_OK")
</pallas_src>

<mosaic_0001>
module attributes {stable_mosaic.version = 11 : i64} {
  func.func @_simple_nn_kernel(%arg0: memref<8x32xf32, #tpu.memory_space<vmem>>, %arg1: memref<32x64xbf16, #tpu.memory_space<vmem>>, %arg2: memref<1x64xf32, #tpu.memory_space<vmem>>, %arg3: memref<64x16xbf16, #tpu.memory_space<vmem>>, %arg4: memref<1x16xf32, #tpu.memory_space<vmem>>, %arg5: memref<8x16xf32, #tpu.memory_space<vmem>>) attributes {dimension_semantics = [], scalar_prefetch = 0 : i64, scratch_operands = 0 : i64, tpu.core_type = #tpu.core_type<tc>} {
    %c0 = arith.constant 0 : index
    %c0_0 = arith.constant 0 : index
    %0 = vector.load %arg0[%c0, %c0_0] : memref<8x32xf32, #tpu.memory_space<vmem>>, vector<8x32xf32>
    %1 = arith.truncf %0 : vector<8x32xf32> to vector<8x32xbf16>
    %c0_1 = arith.constant 0 : index
    %c0_2 = arith.constant 0 : index
    %2 = vector.load %arg1[%c0_1, %c0_2] : memref<32x64xbf16, #tpu.memory_space<vmem>>, vector<32x64xbf16>
    %cst = arith.constant dense<0.000000e+00> : vector<8x64xf32>
    %3 = tpu.matmul %1, %2, %cst {dimension_numbers = #tpu.dot_dimension_numbers<[1], [0], [0], [1], [0, 0, 1, 1], [], []>} : vector<8x32xbf16>, vector<32x64xbf16>, vector<8x64xf32> -> vector<8x64xf32>
    %c0_3 = arith.constant 0 : index
    %c0_4 = arith.constant 0 : index
    %4 = vector.load %arg2[%c0_3, %c0_4] : memref<1x64xf32, #tpu.memory_space<vmem>>, vector<1x64xf32>
    %5 = vector.broadcast %4 : vector<1x64xf32> to vector<8x64xf32>
    %6 = arith.addf %3, %5 : vector<8x64xf32>
    %cst_5 = arith.constant 0.000000e+00 : f32
    %7 = vector.broadcast %cst_5 : f32 to vector<8x64xf32>
    %8 = arith.maximumf %6, %7 : vector<8x64xf32>
    %9 = arith.truncf %8 : vector<8x64xf32> to vector<8x64xbf16>
    %c0_6 = arith.constant 0 : index
    %c0_7 = arith.constant 0 : index
    %10 = vector.load %arg3[%c0_6, %c0_7] : memref<64x16xbf16, #tpu.memory_space<vmem>>, vector<64x16xbf16>
    %cst_8 = arith.constant dense<0.000000e+00> : vector<8x16xf32>
    %11 = tpu.matmul %9, %10, %cst_8 {dimension_numbers = #tpu.dot_dimension_numbers<[1], [0], [0], [1], [0, 0, 1, 1], [], []>} : vector<8x64xbf16>, vector<64x16xbf16>, vector<8x16xf32> -> vector<8x16xf32>
    %c0_9 = arith.constant 0 : index
    %c0_10 = arith.constant 0 : index
    %12 = vector.load %arg4[%c0_9, %c0_10] : memref<1x16xf32, #tpu.memory_space<vmem>>, vector<1x16xf32>
    %13 = vector.broadcast %12 : vector<1x16xf32> to vector<8x16xf32>
    %14 = arith.addf %11, %13 : vector<8x16xf32>
    %c0_11 = arith.constant 0 : index
    %c0_12 = arith.constant 0 : index
    %15 = vector.load %arg5[%c0_11, %c0_12] : memref<8x16xf32, #tpu.memory_space<vmem>>, vector<8x16xf32>
    tpu.vector_store %arg5[%c0_11, %c0_12], %14 {strides = array<i32>} : memref<8x16xf32, #tpu.memory_space<vmem>>, vector<8x16xf32>,
    return
  }
}

</mosaic_0001>

<llo_original>
// kernel: tpu_custom_call.1
$region0: #{tpu_custom_call.1}
  #allocation0 [shape = 'u32[]', space=smem, size = 0x4, offset = 0x4, fixed_abs, tag = 'smem constant byte address 0x4 - core index']
  #allocation1 [shape = 'u32[144,128]{1,0:T(1,128)}', space=vmem, size = 0x12000, scoped, tag = 'internal scratch']
  %s0 = inlined_call_operand.vmem [shape: f32[8,32], index: 0, kind: input, shape index: {}]
  %s1 = inlined_call_operand.vmem [shape: bf16[32,64], index: 1, kind: input, shape index: {}]
  %s2 = inlined_call_operand.vmem [shape: f32[1,64], index: 2, kind: input, shape index: {}]
  %s3 = inlined_call_operand.vmem [shape: bf16[64,16], index: 3, kind: input, shape index: {}]
  %s4 = inlined_call_operand.vmem [shape: f32[1,16], index: 4, kind: input, shape index: {}]
  %s5 = inlined_call_operand.hbm [shape: f32[8,16], index: 5, kind: output, shape index: {}]
  %s6 = sld [smem:[#allocation0]]
  $region30: #{tpu_custom_call.1} parent=0
    _
  %s8 = ssub.s32 1, %s6
  %s9 = scalar_select 0, %s8, %s6
  $region1: #{tpu_custom_call.1} parent=0
    #allocation2 [shape = 'u8[4096]{0}', space=vmem, size = 0x1000, scoped, tag = 'output window, operand 0, single buffered']
    #allocation3 [shape = 's32[1]{0}', space=sflag, size = 0x4, scoped, tag = 'scoped memory for tpu_custom_call.1']
    %10 = vsyncpa [#allocation3], 0
    // Predicated region
    $region2: #{tpu_custom_call.1} parent=1 // pred_check
      _
    $region3: #{tpu_custom_call.1} parent=1 // pred_check_branch
      %12 = sbr.rel (0) target = $region5
    $region4: #{tpu_custom_call.1} parent=1 // pred_region
      _
    $region5: #{tpu_custom_call.1} parent=1 // pred_fallthru
      _
    // Predicated region
    $region6: #{tpu_custom_call.1} parent=1 // pred_check
      _
    $region7: #{tpu_custom_call.1} parent=1 // pred_check_branch
      %14 = sbr.rel (0) target = $region9
    $region8: #{tpu_custom_call.1} parent=1 // pred_region
      _
    $region9: #{tpu_custom_call.1} parent=1 // pred_fallthru
      _
    // Predicated region
    $region10: #{tpu_custom_call.1} parent=1 // pred_check
      _
    $region11: #{tpu_custom_call.1} parent=1 // pred_check_branch
      %16 = sbr.rel (0) target = $region13
    $region12: #{tpu_custom_call.1} parent=1 // pred_region
      _
    $region13: #{tpu_custom_call.1} parent=1 // pred_fallthru
      _
    // Predicated region
    $region14: #{tpu_custom_call.1} parent=1 // pred_check
      _
    $region15: #{tpu_custom_call.1} parent=1 // pred_check_branch
      %18 = sbr.rel (0) target = $region17
    $region16: #{tpu_custom_call.1} parent=1 // pred_region
      _
    $region17: #{tpu_custom_call.1} parent=1 // pred_fallthru
      _
    // Predicated region
    $region18: #{tpu_custom_call.1} parent=1 // pred_check
      _
    $region19: #{tpu_custom_call.1} parent=1 // pred_check_branch
      %20 = sbr.rel (0) target = $region21
    $region20: #{tpu_custom_call.1} parent=1 // pred_region
      _
    $region21: #{tpu_custom_call.1} parent=1 // pred_fallthru
      _
    %v22 = vld [vmem:[%s0] sm:$0xff]
    %v23 = vpack.c.bf16 %v22, %v22
    %v24 = vld [vmem:[%s1] sm:$0xf]
    %v25 = vld [vmem:[%s1 + $0x4] sm:$0xf]
    %v26 = vld [vmem:[%s1 + $0x8] sm:$0xf]
    %v27 = vld [vmem:[%s1 + $0xc] sm:$0xf]
    %v28 = vld [vmem:[%s2] sm:$0x1]
    %v30 = vlaneseq
    %v31 = vshrl.u32 %v30, 7
    %v32 = vsub.s32 0, %v31
    %v33 = vrot.slane %v28, %v32
    %v39 = vunpack.c.l.b16 %v24
    %v40 = vunpack.c.l.b16 %v25
    %v41 = vunpack.c.l.b16 %v26
    %v42 = vunpack.c.l.b16 %v27
    %v43 = vpack.c.b16 %v40, %v39
    %v44 = vpack.c.b16 %v42, %v41
    %vm47 = vcmask 261120
    %v49 = vsel %vm47, %v23, 0
    %51 = vmatprep.subr.bf16.mxu0 0
    %52 = vmatpush1.bf16.msra.mxu0 0
    %53 = vmatprep.subr.bf16.mxu0 0
    %54 = vmatpush1.bf16.msra.mxu0 0
    %55 = vmatprep.subr.bf16.mxu0 0
    %56 = vmatpush1.bf16.msra.mxu0 0
    %57 = vmatprep.subr.bf16.mxu0 0
    %58 = vmatpush1.bf16.msra.mxu0 0
    %59 = vmatprep.subr.bf16.mxu0 0
    %60 = vmatpush1.bf16.msra.mxu0 0
    %61 = vmatprep.subr.bf16.mxu0 0
    %62 = vmatpush1.bf16.msra.mxu0 0
    %63 = vmatprep.subr.bf16.mxu0 0
    %64 = vmatpush1.bf16.msra.mxu0 %v44
    %65 = vmatprep.subr.bf16.mxu0 0
    %66 = vmatpush1.bf16.msra.mxu0 %v43
    %67 = vmatprep.subr.bf16.mxu0 0
    %68 = vmatpush2.bf16.msra.mxu0 0
    %69 = vmatprep.subr.bf16.mxu0 0
    %70 = vmatpush2.bf16.msra.mxu0 0
    %71 = vmatprep.subr.bf16.mxu0 0
    %72 = vmatpush2.bf16.msra.mxu0 0
    %73 = vmatprep.subr.bf16.mxu0 0
    %74 = vmatpush2.bf16.msra.mxu0 0
    %75 = vmatprep.subr.bf16.mxu0 0
    %76 = vmatpush2.bf16.msra.mxu0 0
    %77 = vmatprep.subr.bf16.mxu0 0
    %78 = vmatpush2.bf16.msra.mxu0 0
    %79 = vmatprep.subr.bf16.mxu0 0
    %80 = vmatpush2.bf16.msra.mxu0 0
    %81 = vmatprep.subr.bf16.mxu0 0
    %82 = vmatpush2.bf16.msra.mxu0 0
    %83 = vmatprep.mubr.bf16.mxu0 0
    %84 = vmatmul.mubr.bf16.gmra.mxu0 %v49
    %v85 = vpop.f32.mrf.mxu0
    %v86 = vadd.f32 %v33, %v85
    %v87 = vpop.f32.mrf.mxu0
    %v88 = vpop.f32.mrf.mxu0
    %v89 = vpop.f32.mrf.mxu0
    %90 = vdwg.mxu0
    %v91 = vmax.f32 %v86, 0.0
    %v92 = vpack.c.bf16 %v91, %v91
    %v93 = vld [vmem:[%s3] sm:$0xf]
    %v94 = vld [vmem:[%s3 + $0x4] sm:$0xf]
    %v95 = vld [vmem:[%s3 + $0x8] sm:$0xf]
    %v96 = vld [vmem:[%s3 + $0xc] sm:$0xf]
    %v97 = vld [vmem:[%s3 + $0x10] sm:$0xf]
    %v98 = vld [vmem:[%s3 + $0x14] sm:$0xf]
    %v99 = vld [vmem:[%s3 + $0x18] sm:$0xf]
    %v100 = vld [vmem:[%s3 + $0x1c] sm:$0xf]
    %v101 = vld [vmem:[%s4] sm:$0x1]
    %v103 = vlaneseq
    %v104 = vshrl.u32 %v103, 7
    %v105 = vsub.s32 0, %v104
    %v106 = vrot.slane %v101, %v105
    %v116 = vunpack.c.l.b16 %v93
    %v117 = vunpack.c.l.b16 %v94
    %v118 = vunpack.c.l.b16 %v95
    %v119 = vunpack.c.l.b16 %v96
    %v120 = vunpack.c.l.b16 %v97
    %v121 = vunpack.c.l.b16 %v98
    %v122 = vunpack.c.l.b16 %v99
    %v123 = vunpack.c.l.b16 %v100
    %v124 = vpack.c.b16 %v117, %v116
    %v125 = vpack.c.b16 %v119, %v118
    %v126 = vpack.c.b16 %v121, %v120
    %v127 = vpack.c.b16 %v123, %v122
    %vm132 = vcmask 523264
    %v134 = vsel %vm132, %v92, 0
    %136 = vmatprep.subr.bf16.mxu0 0
    %137 = vmatpush1.bf16.msra.mxu0 0
    %138 = vmatprep.subr.bf16.mxu0 0
    %139 = vmatpush1.bf16.msra.mxu0 0
    %140 = vmatprep.subr.bf16.mxu0 0
    %141 = vmatpush1.bf16.msra.mxu0 0
    %142 = vmatprep.subr.bf16.mxu0 0
    %143 = vmatpush1.bf16.msra.mxu0 0
    %144 = vmatprep.subr.bf16.mxu0 0
    %145 = vmatpush1.bf16.msra.mxu0 %v127
    %146 = vmatprep.subr.bf16.mxu0 0
    %147 = vmatpush1.bf16.msra.mxu0 %v126
    %148 = vmatprep.subr.bf16.mxu0 0
    %149 = vmatpush1.bf16.msra.mxu0 %v125
    %150 = vmatprep.subr.bf16.mxu0 0
    %151 = vmatpush1.bf16.msra.mxu0 %v124
    %152 = vmatprep.subr.bf16.mxu0 0
    %153 = vmatpush2.bf16.msra.mxu0 0
    %154 = vmatprep.subr.bf16.mxu0 0
    %155 = vmatpush2.bf16.msra.mxu0 0
    %156 = vmatprep.subr.bf16.mxu0 0
    %157 = vmatpush2.bf16.msra.mxu0 0
    %158 = vmatprep.subr.bf16.mxu0 0
    %159 = vmatpush2.bf16.msra.mxu0 0
    %160 = vmatprep.subr.bf16.mxu0 0
    %161 = vmatpush2.bf16.msra.mxu0 0
    %162 = vmatprep.subr.bf16.mxu0 0
    %163 = vmatpush2.bf16.msra.mxu0 0
    %164 = vmatprep.subr.bf16.mxu0 0
    %165 = vmatpush2.bf16.msra.mxu0 0
    %166 = vmatprep.subr.bf16.mxu0 0
    %167 = vmatpush2.bf16.msra.mxu0 0
    %168 = vmatprep.mubr.bf16.mxu0 0
    %169 = vmatmul.mubr.bf16.gmra.mxu0 %v134
    %v170 = vpop.f32.mrf.mxu0
    %v171 = vadd.f32 %v106, %v170
    %v172 = vpop.f32.mrf.mxu0
    %v173 = vpop.f32.mrf.mxu0
    %v174 = vpop.f32.mrf.mxu0
    %175 = vdwg.mxu0
    %vm176 = vcmask 130048
    %177 = vst.msk [vmem:[#allocation2] sm:$0xff] %vm176, %v171
    // Predicated region
    $region22: #{tpu_custom_call.1} parent=1 // pred_check
      _
    $region23: #{tpu_custom_call.1} parent=1 // pred_check_branch
      %179 = sbr.rel (0) target = $region25
    $region24: #{tpu_custom_call.1} parent=1 // pred_region
      %s181 = ssub.s32 128, 128
      %182 = vsyncadd [#allocation3], %s181
      %s184 = sshll.u32 [#allocation2], 4
      %s185 = int_to_ptr.vmem [resolvable:$true] %s184
      %187 = dma.vmem_to_hbm [thread:$0]  %s185, 128, %s5, [#allocation3]
    $region25: #{tpu_custom_call.1} parent=1 // pred_fallthru
      _
    // Predicated region
    $region26: #{tpu_custom_call.1} parent=1 // pred_check
      _
    $region27: #{tpu_custom_call.1} parent=1 // pred_check_branch
      %189 = sbr.rel (0) target = $region29
    $region28: #{tpu_custom_call.1} parent=1 // pred_region
      %190 = dma.done [#allocation3], 128
    $region29: #{tpu_custom_call.1} parent=1 // pred_fallthru
      _
    %191 = vsyncpa [#allocation3], 1

</llo_original>
